<compile_context>
chip_gen: v7x
topology: tpu7x:2x2x1
jax: 0.10.0
libtpu: 0.0.40
codegen_flags: <defaults>
</compile_context>

<pallas_src>
import functools
import math

import jax
import jax.numpy as jnp
import numpy as np
from jax.experimental import pallas as pl
from jax.experimental.pallas import tpu as pltpu

# Trunk layer widths from the PyTorch module: Linear(S,64)->Linear(64,128)->Linear(128,256)
_H1, _H2, _H3 = 64, 128, 256


# ---------------------------------------------------------------------------
# Kernel
# ---------------------------------------------------------------------------
def _dqn_kernel(x_ref, w1_ref, w2_ref, w3_ref, wh_ref, bias_ref, out_ref):
    """Fused DQN forward: 3-layer ReLU MLP trunk + all action heads in one matmul.

    bias_ref rows (each zero-padded to the lane width):
      row 0 -> b1 (64), row 1 -> b2 (128), row 2 -> b3 (256), row 3 -> fused head bias.
    Weights may be bf16; matmuls accumulate in f32; bias add / ReLU are f32.
    """
    wdt = w1_ref.dtype
    n_out = out_ref.shape[1]

    x = x_ref[...].astype(wdt)

    h = jnp.dot(x, w1_ref[...], preferred_element_type=jnp.float32)
    h = jnp.maximum(h + bias_ref[0:1, 0:_H1], 0.0)

    h = jnp.dot(h.astype(wdt), w2_ref[...], preferred_element_type=jnp.float32)
    h = jnp.maximum(h + bias_ref[1:2, 0:_H2], 0.0)

    h = jnp.dot(h.astype(wdt), w3_ref[...], preferred_element_type=jnp.float32)
    h = jnp.maximum(h + bias_ref[2:3, 0:_H3], 0.0)

    # All action heads fused into one lane-dense (>=128 wide) matmul + store.
    q = jnp.dot(h.astype(wdt), wh_ref[...], preferred_element_type=jnp.float32)
    out_ref[...] = (q + bias_ref[3:4, 0:n_out]).astype(out_ref.dtype)


# ---------------------------------------------------------------------------
# Parameter init / packing
# ---------------------------------------------------------------------------
def _linear_init(key, fan_in: int, fan_out: int):
    """torch.nn.Linear default init: U(-1/sqrt(fan_in), 1/sqrt(fan_in)).

    Returns (W_T, b) with W_T [fan_in, fan_out] (pre-transposed) and b [fan_out].
    """
    kw, kb = jax.random.split(key)
    bound = 1.0 / math.sqrt(fan_in)
    w_t = jax.random.uniform(kw, (fan_in, fan_out), jnp.float32, -bound, bound)
    b = jax.random.uniform(kb, (fan_out,), jnp.float32, -bound, bound)
    return w_t, b


def init_dqn_params(key, state_size: int, action_sizes: dict):
    keys = jax.random.split(key, 3 + len(action_sizes))
    w1, b1 = _linear_init(keys[0], state_size, _H1)
    w2, b2 = _linear_init(keys[1], _H1, _H2)
    w3, b3 = _linear_init(keys[2], _H2, _H3)
    heads = {}
    for i, (name, size) in enumerate(action_sizes.items()):
        heads[name] = _linear_init(keys[3 + i], _H3, size)
    return dict(w1=w1, b1=b1, w2=w2, b2=b2, w3=w3, b3=b3, heads=heads)


def _pack_params(params, head_names, head_sizes, weight_dtype):
    """Concatenate head weights/biases into padded slabs and pack all biases."""
    total = int(sum(head_sizes))
    head_pad = max(128, ((total + 127) // 128) * 128)  # lane-dense output width

    wh = jnp.zeros((_H3, head_pad), jnp.float32)
    bh = jnp.zeros((head_pad,), jnp.float32)
    off = 0
    for name, size in zip(head_names, head_sizes):
        w, b = params["heads"][name]
        wh = wh.at[:, off:off + size].set(w)
        bh = bh.at[off:off + size].set(b)
        off += size

    bias_width = max(_H3, head_pad)
    bias = jnp.zeros((4, bias_width), jnp.float32)
    bias = bias.at[0, :_H1].set(params["b1"])
    bias = bias.at[1, :_H2].set(params["b2"])
    bias = bias.at[2, :_H3].set(params["b3"])
    bias = bias.at[3, :head_pad].set(bh)

    packed = dict(
        w1=params["w1"].astype(weight_dtype),
        w2=params["w2"].astype(weight_dtype),
        w3=params["w3"].astype(weight_dtype),
        wh=wh.astype(weight_dtype),
        bias=bias,  # biases stay f32 (added to f32 accumulators)
    )
    return packed, head_pad


# ---------------------------------------------------------------------------
# pallas_call wrapper
# ---------------------------------------------------------------------------
@functools.partial(jax.jit, static_argnames=("head_names", "head_sizes", "head_pad"))
def _dqn_forward_impl(state, packed, head_names, head_sizes, head_pad):
    batch, state_size = state.shape

    # Batch tiling: split only when the batch is large and 128-aligned so the
    # parallel grid axis can be sharded across TensorCores (v7x); at small
    # batch the grid is a single full-array step.
    if batch >= 256 and batch % 128 == 0:
        tb = 128
    else:
        tb = batch
    grid = (batch // tb,)

    in_specs = [
        pl.BlockSpec((tb, state_size), lambda i: (i, 0)),        # state: per-tile
        pl.BlockSpec(packed["w1"].shape, lambda i: (0, 0)),      # weights: resident
        pl.BlockSpec(packed["w2"].shape, lambda i: (0, 0)),
        pl.BlockSpec(packed["w3"].shape, lambda i: (0, 0)),
        pl.BlockSpec(packed["wh"].shape, lambda i: (0, 0)),
        pl.BlockSpec(packed["bias"].shape, lambda i: (0, 0)),
    ]
    out_specs = pl.BlockSpec((tb, head_pad), lambda i: (i, 0))
    out_shape = jax.ShapeDtypeStruct((batch, head_pad), jnp.float32)

    slab = pl.pallas_call(
        _dqn_kernel,
        out_shape=out_shape,
        grid=grid,
        in_specs=in_specs,
        out_specs=out_specs,
        compiler_params=pltpu.CompilerParams(dimension_semantics=("parallel",)),
    )(state, packed["w1"], packed["w2"], packed["w3"], packed["wh"], packed["bias"])

    # Slice per-head Q-values from the fused lane-dense output slab.
    out = {}
    off = 0
    for name, size in zip(head_names, head_sizes):
        out[name] = slab[:, off:off + size]
        off += size
    return out


def dqn_forward(state, params, action_sizes, weight_dtype=jnp.bfloat16):
    """Forward pass matching DQNetwork.forward: returns {head_name: q_values}."""
    head_names = tuple(action_sizes.keys())
    head_sizes = tuple(int(action_sizes[n]) for n in head_names)
    packed, head_pad = _pack_params(params, head_names, head_sizes, weight_dtype)
    return _dqn_forward_impl(state, packed, head_names, head_sizes, head_pad)


# ---------------------------------------------------------------------------
# Pure-JAX reference (same bf16 weight casts, f32 accumulation) for checking
# ---------------------------------------------------------------------------
def _reference_forward(state, params, action_sizes, weight_dtype):
    def lin(x, w, b):
        y = jnp.dot(x.astype(weight_dtype), w.astype(weight_dtype),
                    preferred_element_type=jnp.float32)
        return y + b[None, :]

    h = jnp.maximum(lin(state, params["w1"], params["b1"]), 0.0)
    h = jnp.maximum(lin(h, params["w2"], params["b2"]), 0.0)
    h = jnp.maximum(lin(h, params["w3"], params["b3"]), 0.0)
    return {name: lin(h, *params["heads"][name]) for name in action_sizes}


if __name__ == "__main__":
    key = jax.random.PRNGKey(0)
    k_param, k_state = jax.random.split(key)

    state_size = 32
    batch = 8
    action_sizes = {"steering": 3, "throttle": 5, "brake": 2}

    params = init_dqn_params(k_param, state_size, action_sizes)
    state = jax.random.normal(k_state, (batch, state_size), jnp.float32)

    out = dqn_forward(state, params, action_sizes)
    out = jax.block_until_ready(out)

    ref = _reference_forward(state, params, action_sizes, jnp.bfloat16)
    for name, size in action_sizes.items():
        assert out[name].shape == (batch, size), (name, out[name].shape)
        np.testing.assert_allclose(np.asarray(out[name]), np.asarray(ref[name]),
                                   rtol=1e-2, atol=1e-2)

    print("KERNEL_OK")
</pallas_src>

<mosaic_0001>
module attributes {stable_mosaic.version = 11 : i64} {
  func.func @_dqn_kernel(%arg0: i32, %arg1: memref<8x32xf32, #tpu.memory_space<vmem>>, %arg2: memref<32x64xbf16, #tpu.memory_space<vmem>>, %arg3: memref<64x128xbf16, #tpu.memory_space<vmem>>, %arg4: memref<128x256xbf16, #tpu.memory_space<vmem>>, %arg5: memref<256x128xbf16, #tpu.memory_space<vmem>>, %arg6: memref<4x256xf32, #tpu.memory_space<vmem>>, %arg7: memref<8x128xf32, #tpu.memory_space<vmem>>) attributes {dimension_semantics = [#tpu.dimension_semantics<parallel>], iteration_bounds = array<i64: 1>, scalar_prefetch = 0 : i64, scratch_operands = 0 : i64, tpu.core_type = #tpu.core_type<tc>, window_params = [{transform_indices = @transform_0, window_bounds = array<i64: 8, 32>}, {pipeline_mode = #tpu.pipeline_mode<synchronous>, transform_indices = @transform_1, window_bounds = array<i64: 32, 64>}, {pipeline_mode = #tpu.pipeline_mode<synchronous>, transform_indices = @transform_2, window_bounds = array<i64: 64, 128>}, {pipeline_mode = #tpu.pipeline_mode<synchronous>, transform_indices = @transform_3, window_bounds = array<i64: 128, 256>}, {pipeline_mode = #tpu.pipeline_mode<synchronous>, transform_indices = @transform_4, window_bounds = array<i64: 256, 128>}, {pipeline_mode = #tpu.pipeline_mode<synchronous>, transform_indices = @transform_5, window_bounds = array<i64: 4, 256>}, {transform_indices = @transform_6, window_bounds = array<i64: 8, 128>}]} {
    %c0 = arith.constant 0 : index
    %c0_0 = arith.constant 0 : index
    %0 = vector.load %arg1[%c0, %c0_0] : memref<8x32xf32, #tpu.memory_space<vmem>>, vector<8x32xf32>
    %1 = arith.truncf %0 : vector<8x32xf32> to vector<8x32xbf16>
    %c0_1 = arith.constant 0 : index
    %c0_2 = arith.constant 0 : index
    %2 = vector.load %arg2[%c0_1, %c0_2] : memref<32x64xbf16, #tpu.memory_space<vmem>>, vector<32x64xbf16>
    %cst = arith.constant dense<0.000000e+00> : vector<8x64xf32>
    %3 = tpu.matmul %1, %2, %cst {dimension_numbers = #tpu.dot_dimension_numbers<[1], [0], [0], [1], [0, 0, 1, 1], [], []>} : vector<8x32xbf16>, vector<32x64xbf16>, vector<8x64xf32> -> vector<8x64xf32>
    %c0_3 = arith.constant 0 : index
    %c0_4 = arith.constant 0 : index
    %4 = vector.load %arg6[%c0_3, %c0_4] : memref<4x256xf32, #tpu.memory_space<vmem>>, vector<1x64xf32>
    %5 = vector.broadcast %4 : vector<1x64xf32> to vector<8x64xf32>
    %6 = arith.addf %3, %5 : vector<8x64xf32>
    %cst_5 = arith.constant 0.000000e+00 : f32
    %7 = vector.broadcast %cst_5 : f32 to vector<8x64xf32>
    %8 = arith.maximumf %6, %7 : vector<8x64xf32>
    %9 = arith.truncf %8 : vector<8x64xf32> to vector<8x64xbf16>
    %c0_6 = arith.constant 0 : index
    %c0_7 = arith.constant 0 : index
    %10 = vector.load %arg3[%c0_6, %c0_7] : memref<64x128xbf16, #tpu.memory_space<vmem>>, vector<64x128xbf16>
    %cst_8 = arith.constant dense<0.000000e+00> : vector<8x128xf32>
    %11 = tpu.matmul %9, %10, %cst_8 {dimension_numbers = #tpu.dot_dimension_numbers<[1], [0], [0], [1], [0, 0, 1, 1], [], []>} : vector<8x64xbf16>, vector<64x128xbf16>, vector<8x128xf32> -> vector<8x128xf32>
    %c1 = arith.constant 1 : index
    %c0_9 = arith.constant 0 : index
    %12 = vector.load %arg6[%c1, %c0_9] : memref<4x256xf32, #tpu.memory_space<vmem>>, vector<1x128xf32>
    %13 = vector.broadcast %12 : vector<1x128xf32> to vector<8x128xf32>
    %14 = arith.addf %11, %13 : vector<8x128xf32>
    %cst_10 = arith.constant 0.000000e+00 : f32
    %15 = vector.broadcast %cst_10 : f32 to vector<8x128xf32>
    %16 = arith.maximumf %14, %15 : vector<8x128xf32>
    %17 = arith.truncf %16 : vector<8x128xf32> to vector<8x128xbf16>
    %c0_11 = arith.constant 0 : index
    %c0_12 = arith.constant 0 : index
    %18 = vector.load %arg4[%c0_11, %c0_12] : memref<128x256xbf16, #tpu.memory_space<vmem>>, vector<128x256xbf16>
    %cst_13 = arith.constant dense<0.000000e+00> : vector<8x256xf32>
    %19 = tpu.matmul %17, %18, %cst_13 {dimension_numbers = #tpu.dot_dimension_numbers<[1], [0], [0], [1], [0, 0, 1, 1], [], []>} : vector<8x128xbf16>, vector<128x256xbf16>, vector<8x256xf32> -> vector<8x256xf32>
    %c2 = arith.constant 2 : index
    %c0_14 = arith.constant 0 : index
    %20 = vector.load %arg6[%c2, %c0_14] : memref<4x256xf32, #tpu.memory_space<vmem>>, vector<1x256xf32>
    %21 = vector.broadcast %20 : vector<1x256xf32> to vector<8x256xf32>
    %22 = arith.addf %19, %21 : vector<8x256xf32>
    %cst_15 = arith.constant 0.000000e+00 : f32
    %23 = vector.broadcast %cst_15 : f32 to vector<8x256xf32>
    %24 = arith.maximumf %22, %23 : vector<8x256xf32>
    %25 = arith.truncf %24 : vector<8x256xf32> to vector<8x256xbf16>
    %c0_16 = arith.constant 0 : index
    %c0_17 = arith.constant 0 : index
    %26 = vector.load %arg5[%c0_16, %c0_17] : memref<256x128xbf16, #tpu.memory_space<vmem>>, vector<256x128xbf16>
    %cst_18 = arith.constant dense<0.000000e+00> : vector<8x128xf32>
    %27 = tpu.matmul %25, %26, %cst_18 {dimension_numbers = #tpu.dot_dimension_numbers<[1], [0], [0], [1], [0, 0, 1, 1], [], []>} : vector<8x256xbf16>, vector<256x128xbf16>, vector<8x128xf32> -> vector<8x128xf32>
    %c3 = arith.constant 3 : index
    %c0_19 = arith.constant 0 : index
    %28 = vector.load %arg6[%c3, %c0_19] : memref<4x256xf32, #tpu.memory_space<vmem>>, vector<1x128xf32>
    %29 = vector.broadcast %28 : vector<1x128xf32> to vector<8x128xf32>
    %30 = arith.addf %27, %29 : vector<8x128xf32>
    %c0_20 = arith.constant 0 : index
    %c0_21 = arith.constant 0 : index
    %31 = vector.load %arg7[%c0_20, %c0_21] : memref<8x128xf32, #tpu.memory_space<vmem>>, vector<8x128xf32>
    tpu.vector_store %arg7[%c0_20, %c0_21], %30 {strides = array<i32>} : memref<8x128xf32, #tpu.memory_space<vmem>>, vector<8x128xf32>,
    return
  }
  func.func @transform_0(%arg0: i32) -> (i32, i32) {
    %c0_i32 = arith.constant 0 : i32
    %c0_i32_0 = arith.constant 0 : i32
    return %arg0, %c0_i32 : i32, i32
  }
  func.func @transform_1(%arg0: i32) -> (i32, i32) {
    %c0_i32 = arith.constant 0 : i32
    %c0_i32_0 = arith.constant 0 : i32
    %c0_i32_1 = arith.constant 0 : i32
    return %c0_i32, %c0_i32_0 : i32, i32
  }
  func.func @transform_2(%arg0: i32) -> (i32, i32) {
    %c0_i32 = arith.constant 0 : i32
    %c0_i32_0 = arith.constant 0 : i32
    %c0_i32_1 = arith.constant 0 : i32
    return %c0_i32, %c0_i32_0 : i32, i32
  }
  func.func @transform_3(%arg0: i32) -> (i32, i32) {
    %c0_i32 = arith.constant 0 : i32
    %c0_i32_0 = arith.constant 0 : i32
    %c0_i32_1 = arith.constant 0 : i32
    return %c0_i32, %c0_i32_0 : i32, i32
  }
  func.func @transform_4(%arg0: i32) -> (i32, i32) {
    %c0_i32 = arith.constant 0 : i32
    %c0_i32_0 = arith.constant 0 : i32
    %c0_i32_1 = arith.constant 0 : i32
    return %c0_i32, %c0_i32_0 : i32, i32
  }
  func.func @transform_5(%arg0: i32) -> (i32, i32) {
    %c0_i32 = arith.constant 0 : i32
    %c0_i32_0 = arith.constant 0 : i32
    %c0_i32_1 = arith.constant 0 : i32
    return %c0_i32, %c0_i32_0 : i32, i32
  }
  func.func @transform_6(%arg0: i32) -> (i32, i32) {
    %c0_i32 = arith.constant 0 : i32
    %c0_i32_0 = arith.constant 0 : i32
    return %arg0, %c0_i32 : i32, i32
  }
}

</mosaic_0001>

<llo_original>
// kernel: _dqn_forward_impl.1
$region0: #{_dqn_forward_impl.1}
  #allocation0 [shape = 'u32[]', space=smem, size = 0x4, offset = 0x4, fixed_abs, tag = 'smem constant byte address 0x4 - core index']
  #allocation1 [shape = 'u32[144,128]{1,0:T(1,128)}', space=vmem, size = 0x12000, scoped, tag = 'internal scratch']
  %s0 = inlined_call_operand.hbm [shape: f32[8,32], index: 0, kind: input, shape index: {}]
  %s1 = inlined_call_operand.hbm [shape: bf16[32,64], index: 1, kind: input, shape index: {}]
  %s2 = inlined_call_operand.hbm [shape: bf16[64,128], index: 2, kind: input, shape index: {}]
  %s3 = inlined_call_operand.hbm [shape: bf16[128,256], index: 3, kind: input, shape index: {}]
  %s4 = inlined_call_operand.hbm [shape: bf16[256,128], index: 4, kind: input, shape index: {}]
  %s5 = inlined_call_operand.vmem [shape: f32[4,256], index: 5, kind: input, shape index: {}]
  %s6 = inlined_call_operand.vmem [shape: f32[8,128], index: 6, kind: output, shape index: {}]
  %s7 = sld [smem:[#allocation0]]
  $region54: #{_dqn_forward_impl.1} parent=0
    _
  %s9 = ssub.s32 1, %s7
  %s10 = scalar_select 0, %s9, %s7
  $region1: #{_dqn_forward_impl.1} parent=0
    #allocation2 [shape = 'u8[4096]{0}', space=vmem, size = 0x1000, scoped, tag = 'input window, operand 0, single buffered']
    #allocation3 [shape = 's32[1]{0}', space=sflag, size = 0x4, scoped, tag = 'scoped memory for _dqn_forward_impl.1']
    #allocation4 [shape = 'u8[8192]{0}', space=vmem, size = 0x2000, scoped, tag = 'input window, operand 1, single buffered']
    #allocation5 [shape = 's32[1]{0}', space=sflag, size = 0x4, scoped, tag = 'scoped memory for _dqn_forward_impl.1']
    #allocation6 [shape = 'u8[16384]{0}', space=vmem, size = 0x4000, scoped, tag = 'input window, operand 2, single buffered']
    #allocation7 [shape = 'u8[65536]{0}', space=vmem, size = 0x10000, scoped, tag = 'input window, operand 3, single buffered']
    #allocation8 [shape = 's32[1]{0}', space=sflag, size = 0x4, scoped, tag = 'scoped memory for _dqn_forward_impl.1']
    #allocation9 [shape = 'u8[65536]{0}', space=vmem, size = 0x10000, scoped, tag = 'input window, operand 4, single buffered']
    %11 = vsyncpa [#allocation3], 0
    %12 = vsyncpa [#allocation5], 0
    %13 = vsyncpa [#allocation8], 0
    // Predicated region
    $region2: #{_dqn_forward_impl.1} parent=1 // pred_check
      _
    $region3: #{_dqn_forward_impl.1} parent=1 // pred_check_branch
      %15 = sbr.rel (0) target = $region5
    $region4: #{_dqn_forward_impl.1} parent=1 // pred_region
      %s17 = ssub.s32 128, 128
      %18 = vsyncadd [#allocation3], %s17
      %s20 = sshll.u32 [#allocation2], 4
      %s21 = int_to_ptr.vmem [resolvable:$true] %s20
      %23 = dma.hbm_to_vmem [thread:$0]  %s0, 128, %s21, [#allocation3]
    $region5: #{_dqn_forward_impl.1} parent=1 // pred_fallthru
      _
    // Predicated region
    $region6: #{_dqn_forward_impl.1} parent=1 // pred_check
      _
    $region7: #{_dqn_forward_impl.1} parent=1 // pred_check_branch
      %25 = sbr.rel (0) target = $region9
    $region8: #{_dqn_forward_impl.1} parent=1 // pred_region
      %s27 = ssub.s32 256, 256
      %28 = vsyncadd [#allocation5], %s27
      %s29 = sshll.u32 [#allocation4], 4
      %s30 = int_to_ptr.vmem [resolvable:$true] %s29
      %35 = dma.hbm_to_vmem [thread:$0]  %s1, 256, %s30, [#allocation5], 64, 64, 4
    $region9: #{_dqn_forward_impl.1} parent=1 // pred_fallthru
      _
    // Predicated region
    $region10: #{_dqn_forward_impl.1} parent=1 // pred_check
      _
    $region11: #{_dqn_forward_impl.1} parent=1 // pred_check_branch
      %37 = sbr.rel (0) target = $region13
    $region12: #{_dqn_forward_impl.1} parent=1 // pred_region
      %s39 = ssub.s32 512, 512
      %40 = vsyncadd [#allocation5], %s39
      %s41 = sshll.u32 [#allocation6], 4
      %s42 = int_to_ptr.vmem [resolvable:$true] %s41
      %47 = dma.hbm_to_vmem [thread:$0]  %s2, 512, %s42, [#allocation5], 64, 64, 4
    $region13: #{_dqn_forward_impl.1} parent=1 // pred_fallthru
      _
    // Predicated region
    $region14: #{_dqn_forward_impl.1} parent=1 // pred_check
      _
    $region15: #{_dqn_forward_impl.1} parent=1 // pred_check_branch
      %49 = sbr.rel (0) target = $region17
    $region16: #{_dqn_forward_impl.1} parent=1 // pred_region
      %s51 = ssub.s32 2048, 2048
      %52 = vsyncadd [#allocation8], %s51
      %s53 = sshll.u32 [#allocation7], 4
      %s54 = int_to_ptr.vmem [resolvable:$true] %s53
      %59 = dma.hbm_to_vmem [thread:$0]  %s3, 2048, %s54, [#allocation8], 128, 128, 8
    $region17: #{_dqn_forward_impl.1} parent=1 // pred_fallthru
      _
    // Predicated region
    $region18: #{_dqn_forward_impl.1} parent=1 // pred_check
      _
    $region19: #{_dqn_forward_impl.1} parent=1 // pred_check_branch
      %61 = sbr.rel (0) target = $region21
    $region20: #{_dqn_forward_impl.1} parent=1 // pred_region
      %s63 = ssub.s32 2048, 2048
      %64 = vsyncadd [#allocation8], %s63
      %s65 = sshll.u32 [#allocation9], 4
      %s66 = int_to_ptr.vmem [resolvable:$true] %s65
      %71 = dma.hbm_to_vmem [thread:$0]  %s4, 2048, %s66, [#allocation8], 64, 64, 4
    $region21: #{_dqn_forward_impl.1} parent=1 // pred_fallthru
      _
    // Predicated region
    $region22: #{_dqn_forward_impl.1} parent=1 // pred_check
      _
    $region23: #{_dqn_forward_impl.1} parent=1 // pred_check_branch
      %73 = sbr.rel (0) target = $region25
    $region24: #{_dqn_forward_impl.1} parent=1 // pred_region
      _
    $region25: #{_dqn_forward_impl.1} parent=1 // pred_fallthru
      _
    // Predicated region
    $region26: #{_dqn_forward_impl.1} parent=1 // pred_check
      _
    $region27: #{_dqn_forward_impl.1} parent=1 // pred_check_branch
      %75 = sbr.rel (0) target = $region29
    $region28: #{_dqn_forward_impl.1} parent=1 // pred_region
      %76 = dma.done [#allocation3], 128
    $region29: #{_dqn_forward_impl.1} parent=1 // pred_fallthru
      _
    // Predicated region
    $region30: #{_dqn_forward_impl.1} parent=1 // pred_check
      _
    $region31: #{_dqn_forward_impl.1} parent=1 // pred_check_branch
      %78 = sbr.rel (0) target = $region33
    $region32: #{_dqn_forward_impl.1} parent=1 // pred_region
      %79 = dma.done [#allocation5], 256
    $region33: #{_dqn_forward_impl.1} parent=1 // pred_fallthru
      _
    // Predicated region
    $region34: #{_dqn_forward_impl.1} parent=1 // pred_check
      _
    $region35: #{_dqn_forward_impl.1} parent=1 // pred_check_branch
      %81 = sbr.rel (0) target = $region37
    $region36: #{_dqn_forward_impl.1} parent=1 // pred_region
      %82 = dma.done [#allocation5], 512
    $region37: #{_dqn_forward_impl.1} parent=1 // pred_fallthru
      _
    // Predicated region
    $region38: #{_dqn_forward_impl.1} parent=1 // pred_check
      _
    $region39: #{_dqn_forward_impl.1} parent=1 // pred_check_branch
      %84 = sbr.rel (0) target = $region41
    $region40: #{_dqn_forward_impl.1} parent=1 // pred_region
      %85 = dma.done [#allocation8], 2048
    $region41: #{_dqn_forward_impl.1} parent=1 // pred_fallthru
      _
    // Predicated region
    $region42: #{_dqn_forward_impl.1} parent=1 // pred_check
      _
    $region43: #{_dqn_forward_impl.1} parent=1 // pred_check_branch
      %87 = sbr.rel (0) target = $region45
    $region44: #{_dqn_forward_impl.1} parent=1 // pred_region
      %88 = dma.done [#allocation8], 2048
    $region45: #{_dqn_forward_impl.1} parent=1 // pred_fallthru
      _
    %v90 = vld [vmem:[#allocation2] sm:$0xff]
    %v91 = vpack.c.bf16 %v90, %v90
    %v92 = vld [vmem:[#allocation4] sm:$0xf]
    %v93 = vld [vmem:[#allocation4 + $0x4] sm:$0xf]
    %v94 = vld [vmem:[#allocation4 + $0x8] sm:$0xf]
    %v95 = vld [vmem:[#allocation4 + $0xc] sm:$0xf]
    %v96 = vld [vmem:[%s5] sm:$0x1]
    %v97 = vlaneseq
    %v98 = vshrl.u32 %v97, 7
    %v99 = vsub.s32 0, %v98
    %v100 = vrot.slane %v96, %v99
    %v105 = vunpack.c.l.b16 %v92
    %v106 = vunpack.c.l.b16 %v93
    %v107 = vunpack.c.l.b16 %v94
    %v108 = vunpack.c.l.b16 %v95
    %v109 = vpack.c.b16 %v106, %v105
    %v110 = vpack.c.b16 %v108, %v107
    %vm113 = vcmask 261120
    %v115 = vsel %vm113, %v91, 0
    %117 = vmatprep.subr.bf16.mxu0 0
    %118 = vmatpush1.bf16.msra.mxu0 %v109
    %119 = vmatprep.subr.bf16.mxu0 0
    %120 = vmatpush1.bf16.msra.mxu0 %v110
    %121 = vmatprep.subr.bf16.mxu0 0
    %122 = vmatpush1.bf16.msra.mxu0 0
    %123 = vmatprep.subr.bf16.mxu0 0
    %124 = vmatpush1.bf16.msra.mxu0 0
    %125 = vmatprep.subr.bf16.mxu0 0
    %126 = vmatpush1.bf16.msra.mxu0 0
    %127 = vmatprep.subr.bf16.mxu0 0
    %128 = vmatpush1.bf16.msra.mxu0 0
    %129 = vmatprep.subr.bf16.mxu0 0
    %130 = vmatpush1.bf16.msra.mxu0 0
    %131 = vmatprep.subr.bf16.mxu0 0
    %132 = vmatpush1.bf16.msra.mxu0 0
    %133 = vmatprep.subr.bf16.mxu0 0
    %134 = vmatpush1.bf16.msra.mxu0 0
    %135 = vmatprep.subr.bf16.mxu0 0
    %136 = vmatpush1.bf16.msra.mxu0 0
    %137 = vmatprep.subr.bf16.mxu0 0
    %138 = vmatpush1.bf16.msra.mxu0 0
    %139 = vmatprep.subr.bf16.mxu0 0
    %140 = vmatpush1.bf16.msra.mxu0 0
    %141 = vmatprep.subr.bf16.mxu0 0
    %142 = vmatpush1.bf16.msra.mxu0 0
    %143 = vmatprep.subr.bf16.mxu0 0
    %144 = vmatpush1.bf16.msra.mxu0 0
    %145 = vmatprep.subr.bf16.mxu0 0
    %146 = vmatpush1.bf16.msra.mxu0 0
    %147 = vmatprep.subr.bf16.mxu0 0
    %148 = vmatpush1.bf16.msra.mxu0 0
    %149 = vmatprep.mubr.bf16.mxu0 0
    %150 = vmatmul.mubr.bf16.gmra.mrb[0].mxu0 %v115
    %v151 = vpop.f32.mrb[0].mxu0
    %v152 = vadd.f32 %v100, %v151
    %v153 = vpop.f32.mrb[0].mxu0
    %v154 = vpop.f32.mrb[0].mxu0
    %v155 = vpop.f32.mrb[0].mxu0
    %156 = vdwg.mxu0
    %v157 = vmax.f32 %v152, 0.0
    %v158 = vpack.c.bf16 %v157, %v157
    %v159 = vld [vmem:[#allocation6] sm:$0xf]
    %v160 = vld [vmem:[#allocation6 + $0x4] sm:$0xf]
    %v161 = vld [vmem:[#allocation6 + $0x8] sm:$0xf]
    %v162 = vld [vmem:[#allocation6 + $0xc] sm:$0xf]
    %v163 = vld [vmem:[#allocation6 + $0x10] sm:$0xf]
    %v164 = vld [vmem:[#allocation6 + $0x14] sm:$0xf]
    %v165 = vld [vmem:[#allocation6 + $0x18] sm:$0xf]
    %v166 = vld [vmem:[#allocation6 + $0x1c] sm:$0xf]
    %v167 = vld [vmem:[%s5 + $0x1] sm:$0x1]
    %v168 = vlaneseq
    %v169 = vshrl.u32 %v168, 7
    %v170 = vsub.s32 0, %v169
    %v171 = vrot.slane %v167, %v170
    %v180 = vunpack.c.l.b16 %v159
    %v181 = vunpack.c.l.b16 %v160
    %v182 = vunpack.c.l.b16 %v161
    %v183 = vunpack.c.l.b16 %v162
    %v184 = vunpack.c.l.b16 %v163
    %v185 = vunpack.c.l.b16 %v164
    %v186 = vunpack.c.l.b16 %v165
    %v187 = vunpack.c.l.b16 %v166
    %v188 = vpack.c.b16 %v181, %v180
    %v189 = vpack.c.b16 %v183, %v182
    %v190 = vpack.c.b16 %v185, %v184
    %v191 = vpack.c.b16 %v187, %v186
    %vm196 = vcmask 523264
    %v198 = vsel %vm196, %v158, 0
    %200 = vmatprep.subr.bf16.mxu0 0
    %201 = vmatpush1.bf16.msra.mxu0 %v188
    %202 = vmatprep.subr.bf16.mxu0 0
    %203 = vmatpush1.bf16.msra.mxu0 %v189
    %204 = vmatprep.subr.bf16.mxu0 0
    %205 = vmatpush1.bf16.msra.mxu0 %v190
    %206 = vmatprep.subr.bf16.mxu0 0
    %207 = vmatpush1.bf16.msra.mxu0 %v191
    %208 = vmatprep.subr.bf16.mxu0 0
    %209 = vmatpush1.bf16.msra.mxu0 0
    %210 = vmatprep.subr.bf16.mxu0 0
    %211 = vmatpush1.bf16.msra.mxu0 0
    %212 = vmatprep.subr.bf16.mxu0 0
    %213 = vmatpush1.bf16.msra.mxu0 0
    %214 = vmatprep.subr.bf16.mxu0 0
    %215 = vmatpush1.bf16.msra.mxu0 0
    %216 = vmatprep.subr.bf16.mxu0 0
    %217 = vmatpush1.bf16.msra.mxu0 0
    %218 = vmatprep.subr.bf16.mxu0 0
    %219 = vmatpush1.bf16.msra.mxu0 0
    %220 = vmatprep.subr.bf16.mxu0 0
    %221 = vmatpush1.bf16.msra.mxu0 0
    %222 = vmatprep.subr.bf16.mxu0 0
    %223 = vmatpush1.bf16.msra.mxu0 0
    %224 = vmatprep.subr.bf16.mxu0 0
    %225 = vmatpush1.bf16.msra.mxu0 0
    %226 = vmatprep.subr.bf16.mxu0 0
    %227 = vmatpush1.bf16.msra.mxu0 0
    %228 = vmatprep.subr.bf16.mxu0 0
    %229 = vmatpush1.bf16.msra.mxu0 0
    %230 = vmatprep.subr.bf16.mxu0 0
    %231 = vmatpush1.bf16.msra.mxu0 0
    %232 = vmatprep.mubr.bf16.mxu0 0
    %233 = vmatmul.mubr.bf16.gmra.mrb[0].mxu0 %v198
    %v234 = vpop.f32.mrb[0].mxu0
    %v235 = vadd.f32 %v171, %v234
    %v236 = vpop.f32.mrb[0].mxu0
    %v237 = vpop.f32.mrb[0].mxu0
    %v238 = vpop.f32.mrb[0].mxu0
    %239 = vdwg.mxu0
    %v240 = vmax.f32 %v235, 0.0
    %v241 = vpack.c.bf16 %v240, %v240
    %v242 = vld [vmem:[#allocation7] sm:$0xff]
    %v243 = vld [vmem:[#allocation7 + $0x8] sm:$0xff]
    %v244 = vld [vmem:[#allocation7 + $0x10] sm:$0xff]
    %v245 = vld [vmem:[#allocation7 + $0x18] sm:$0xff]
    %v246 = vld [vmem:[#allocation7 + $0x20] sm:$0xff]
    %v247 = vld [vmem:[#allocation7 + $0x28] sm:$0xff]
    %v248 = vld [vmem:[#allocation7 + $0x30] sm:$0xff]
    %v249 = vld [vmem:[#allocation7 + $0x38] sm:$0xff]
    %v250 = vld [vmem:[#allocation7 + $0x40] sm:$0xff]
    %v251 = vld [vmem:[#allocation7 + $0x48] sm:$0xff]
    %v252 = vld [vmem:[#allocation7 + $0x50] sm:$0xff]
    %v253 = vld [vmem:[#allocation7 + $0x58] sm:$0xff]
    %v254 = vld [vmem:[#allocation7 + $0x60] sm:$0xff]
    %v255 = vld [vmem:[#allocation7 + $0x68] sm:$0xff]
    %v256 = vld [vmem:[#allocation7 + $0x70] sm:$0xff]
    %v257 = vld [vmem:[#allocation7 + $0x78] sm:$0xff]
    %s258 = scalar_lea.vmem %s5, 2
    %v259 = vld [vmem:[%s258] ss:$4 sm:$0x3]
    %v261 = vlaneseq
    %v262 = vshrl.u32 %v261, 7
    %v263 = vsub.s32 0, %v262
    %v264 = vrot.slane %v259, %v263
    %v265 = vlaneseq
    %v266 = vshrl.u32 %v265, 7
    %v267 = vsub.s32 1, %v266
    %v268 = vrot.slane %v259, %v267
    %v287 = vunpack.c.l.b16 %v242
    %v288 = vunpack.c.h.b16 %v242
    %v289 = vunpack.c.l.b16 %v243
    %v290 = vunpack.c.h.b16 %v243
    %v291 = vunpack.c.l.b16 %v244
    %v292 = vunpack.c.h.b16 %v244
    %v293 = vunpack.c.l.b16 %v245
    %v294 = vunpack.c.h.b16 %v245
    %v295 = vunpack.c.l.b16 %v246
    %v296 = vunpack.c.h.b16 %v246
    %v297 = vunpack.c.l.b16 %v247
    %v298 = vunpack.c.h.b16 %v247
    %v299 = vunpack.c.l.b16 %v248
    %v300 = vunpack.c.h.b16 %v248
    %v301 = vunpack.c.l.b16 %v249
    %v302 = vunpack.c.h.b16 %v249
    %v303 = vunpack.c.l.b16 %v250
    %v304 = vunpack.c.h.b16 %v250
    %v305 = vunpack.c.l.b16 %v251
    %v306 = vunpack.c.h.b16 %v251
    %v307 = vunpack.c.l.b16 %v252
    %v308 = vunpack.c.h.b16 %v252
    %v309 = vunpack.c.l.b16 %v253
    %v310 = vunpack.c.h.b16 %v253
    %v311 = vunpack.c.l.b16 %v254
    %v312 = vunpack.c.h.b16 %v254
    %v313 = vunpack.c.l.b16 %v255
    %v314 = vunpack.c.h.b16 %v255
    %v315 = vunpack.c.l.b16 %v256
    %v316 = vunpack.c.h.b16 %v256
    %v317 = vunpack.c.l.b16 %v257
    %v318 = vunpack.c.h.b16 %v257
    %v319 = vpack.c.b16 %v289, %v287
    %v320 = vpack.c.b16 %v290, %v288
    %v321 = vpack.c.b16 %v293, %v291
    %v322 = vpack.c.b16 %v294, %v292
    %v323 = vpack.c.b16 %v297, %v295
    %v324 = vpack.c.b16 %v298, %v296
    %v325 = vpack.c.b16 %v301, %v299
    %v326 = vpack.c.b16 %v302, %v300
    %v327 = vpack.c.b16 %v305, %v303
    %v328 = vpack.c.b16 %v306, %v304
    %v329 = vpack.c.b16 %v309, %v307
    %v330 = vpack.c.b16 %v310, %v308
    %v331 = vpack.c.b16 %v313, %v311
    %v332 = vpack.c.b16 %v314, %v312
    %v333 = vpack.c.b16 %v317, %v315
    %v334 = vpack.c.b16 %v318, %v316
    %351 = vmatprep.subr.bf16.mxu0 %v320
    %352 = vmatpush1.bf16.msra.mxu0 %v319
    %353 = vmatprep.subr.bf16.mxu0 %v322
    %354 = vmatpush1.bf16.msra.mxu0 %v321
    %355 = vmatprep.subr.bf16.mxu0 %v324
    %356 = vmatpush1.bf16.msra.mxu0 %v323
    %357 = vmatprep.subr.bf16.mxu0 %v326
    %358 = vmatpush1.bf16.msra.mxu0 %v325
    %359 = vmatprep.subr.bf16.mxu0 %v328
    %360 = vmatpush1.bf16.msra.mxu0 %v327
    %361 = vmatprep.subr.bf16.mxu0 %v330
    %362 = vmatpush1.bf16.msra.mxu0 %v329
    %363 = vmatprep.subr.bf16.mxu0 %v332
    %364 = vmatpush1.bf16.msra.mxu0 %v331
    %365 = vmatprep.subr.bf16.mxu0 %v334
    %366 = vmatpush1.bf16.msra.mxu0 %v333
    %367 = vmatprep.subr.bf16.mxu0 0
    %368 = vmatpush1.bf16.msra.mxu0 0
    %369 = vmatprep.subr.bf16.mxu0 0
    %370 = vmatpush1.bf16.msra.mxu0 0
    %371 = vmatprep.subr.bf16.mxu0 0
    %372 = vmatpush1.bf16.msra.mxu0 0
    %373 = vmatprep.subr.bf16.mxu0 0
    %374 = vmatpush1.bf16.msra.mxu0 0
    %375 = vmatprep.subr.bf16.mxu0 0
    %376 = vmatpush1.bf16.msra.mxu0 0
    %377 = vmatprep.subr.bf16.mxu0 0
    %378 = vmatpush1.bf16.msra.mxu0 0
    %379 = vmatprep.subr.bf16.mxu0 0
    %380 = vmatpush1.bf16.msra.mxu0 0
    %381 = vmatprep.subr.bf16.mxu0 0
    %382 = vmatpush1.bf16.msra.mxu0 0
    %383 = vmatprep.mubr.bf16.mxu0 0
    %384 = vmatmul.mubr.bf16.gmra.mrb[0].mxu0 %v241
    %v385 = vpop.f32.mrb[0].mxu0
    %v386 = vadd.f32 %v264, %v385
    %v387 = vpop.f32.mrb[0].mxu0
    %v388 = vadd.f32 %v268, %v387
    %v389 = vpop.f32.mrb[0].mxu0
    %v390 = vpop.f32.mrb[0].mxu0
    %391 = vdwg.mxu0
    %v392 = vmax.f32 %v386, 0.0
    %v393 = vmax.f32 %v388, 0.0
    %v394 = vpack.c.bf16 %v392, %v392
    %v395 = vpack.c.bf16 %v393, %v393
    %v396 = vld [vmem:[#allocation9] sm:$0xf]
    %v397 = vld [vmem:[#allocation9 + $0x4] sm:$0xf]
    %v398 = vld [vmem:[#allocation9 + $0x8] sm:$0xf]
    %v399 = vld [vmem:[#allocation9 + $0xc] sm:$0xf]
    %v400 = vld [vmem:[#allocation9 + $0x10] sm:$0xf]
    %v401 = vld [vmem:[#allocation9 + $0x14] sm:$0xf]
    %v402 = vld [vmem:[#allocation9 + $0x18] sm:$0xf]
    %v403 = vld [vmem:[#allocation9 + $0x1c] sm:$0xf]
    %v404 = vld [vmem:[#allocation9 + $0x20] sm:$0xf]
    %v405 = vld [vmem:[#allocation9 + $0x24] sm:$0xf]
    %v406 = vld [vmem:[#allocation9 + $0x28] sm:$0xf]
    %v407 = vld [vmem:[#allocation9 + $0x2c] sm:$0xf]
    %v408 = vld [vmem:[#allocation9 + $0x30] sm:$0xf]
    %v409 = vld [vmem:[#allocation9 + $0x34] sm:$0xf]
    %v410 = vld [vmem:[#allocation9 + $0x38] sm:$0xf]
    %v411 = vld [vmem:[#allocation9 + $0x3c] sm:$0xf]
    %v412 = vld [vmem:[#allocation9 + $0x40] sm:$0xf]
    %v413 = vld [vmem:[#allocation9 + $0x44] sm:$0xf]
    %v414 = vld [vmem:[#allocation9 + $0x48] sm:$0xf]
    %v415 = vld [vmem:[#allocation9 + $0x4c] sm:$0xf]
    %v416 = vld [vmem:[#allocation9 + $0x50] sm:$0xf]
    %v417 = vld [vmem:[#allocation9 + $0x54] sm:$0xf]
    %v418 = vld [vmem:[#allocation9 + $0x58] sm:$0xf]
    %v419 = vld [vmem:[#allocation9 + $0x5c] sm:$0xf]
    %v420 = vld [vmem:[#allocation9 + $0x60] sm:$0xf]
    %v421 = vld [vmem:[#allocation9 + $0x64] sm:$0xf]
    %v422 = vld [vmem:[#allocation9 + $0x68] sm:$0xf]
    %v423 = vld [vmem:[#allocation9 + $0x6c] sm:$0xf]
    %v424 = vld [vmem:[#allocation9 + $0x70] sm:$0xf]
    %v425 = vld [vmem:[#allocation9 + $0x74] sm:$0xf]
    %v426 = vld [vmem:[#allocation9 + $0x78] sm:$0xf]
    %v427 = vld [vmem:[#allocation9 + $0x7c] sm:$0xf]
    %v428 = vld [vmem:[%s5 + $0x3] sm:$0x1]
    %v429 = vlaneseq
    %v430 = vshrl.u32 %v429, 7
    %v431 = vsub.s32 0, %v430
    %v432 = vrot.slane %v428, %v431
    %v465 = vunpack.c.l.b16 %v396
    %v466 = vunpack.c.l.b16 %v397
    %v467 = vunpack.c.l.b16 %v398
    %v468 = vunpack.c.l.b16 %v399
    %v469 = vunpack.c.l.b16 %v400
    %v470 = vunpack.c.l.b16 %v401
    %v471 = vunpack.c.l.b16 %v402
    %v472 = vunpack.c.l.b16 %v403
    %v473 = vunpack.c.l.b16 %v404
    %v474 = vunpack.c.l.b16 %v405
    %v475 = vunpack.c.l.b16 %v406
    %v476 = vunpack.c.l.b16 %v407
    %v477 = vunpack.c.l.b16 %v408
    %v478 = vunpack.c.l.b16 %v409
    %v479 = vunpack.c.l.b16 %v410
    %v480 = vunpack.c.l.b16 %v411
    %v481 = vunpack.c.l.b16 %v412
    %v482 = vunpack.c.l.b16 %v413
    %v483 = vunpack.c.l.b16 %v414
    %v484 = vunpack.c.l.b16 %v415
    %v485 = vunpack.c.l.b16 %v416
    %v486 = vunpack.c.l.b16 %v417
    %v487 = vunpack.c.l.b16 %v418
    %v488 = vunpack.c.l.b16 %v419
    %v489 = vunpack.c.l.b16 %v420
    %v490 = vunpack.c.l.b16 %v421
    %v491 = vunpack.c.l.b16 %v422
    %v492 = vunpack.c.l.b16 %v423
    %v493 = vunpack.c.l.b16 %v424
    %v494 = vunpack.c.l.b16 %v425
    %v495 = vunpack.c.l.b16 %v426
    %v496 = vunpack.c.l.b16 %v427
    %v497 = vpack.c.b16 %v466, %v465
    %v498 = vpack.c.b16 %v468, %v467
    %v499 = vpack.c.b16 %v470, %v469
    %v500 = vpack.c.b16 %v472, %v471
    %v501 = vpack.c.b16 %v474, %v473
    %v502 = vpack.c.b16 %v476, %v475
    %v503 = vpack.c.b16 %v478, %v477
    %v504 = vpack.c.b16 %v480, %v479
    %v505 = vpack.c.b16 %v482, %v481
    %v506 = vpack.c.b16 %v484, %v483
    %v507 = vpack.c.b16 %v486, %v485
    %v508 = vpack.c.b16 %v488, %v487
    %v509 = vpack.c.b16 %v490, %v489
    %v510 = vpack.c.b16 %v492, %v491
    %v511 = vpack.c.b16 %v494, %v493
    %v512 = vpack.c.b16 %v496, %v495
    %529 = vmatprep.subr.bf16.mxu0 0
    %530 = vmatpush1.bf16.msra.mxu0 %v497
    %531 = vmatprep.subr.bf16.mxu0 0
    %532 = vmatpush1.bf16.msra.mxu0 %v498
    %533 = vmatprep.subr.bf16.mxu0 0
    %534 = vmatpush1.bf16.msra.mxu0 %v499
    %535 = vmatprep.subr.bf16.mxu0 0
    %536 = vmatpush1.bf16.msra.mxu0 %v500
    %537 = vmatprep.subr.bf16.mxu0 0
    %538 = vmatpush1.bf16.msra.mxu0 %v501
    %539 = vmatprep.subr.bf16.mxu0 0
    %540 = vmatpush1.bf16.msra.mxu0 %v502
    %541 = vmatprep.subr.bf16.mxu0 0
    %542 = vmatpush1.bf16.msra.mxu0 %v503
    %543 = vmatprep.subr.bf16.mxu0 0
    %544 = vmatpush1.bf16.msra.mxu0 %v504
    %545 = vmatprep.subr.bf16.mxu0 0
    %546 = vmatpush1.bf16.msra.mxu0 %v505
    %547 = vmatprep.subr.bf16.mxu0 0
    %548 = vmatpush1.bf16.msra.mxu0 %v506
    %549 = vmatprep.subr.bf16.mxu0 0
    %550 = vmatpush1.bf16.msra.mxu0 %v507
    %551 = vmatprep.subr.bf16.mxu0 0
    %552 = vmatpush1.bf16.msra.mxu0 %v508
    %553 = vmatprep.subr.bf16.mxu0 0
    %554 = vmatpush1.bf16.msra.mxu0 %v509
    %555 = vmatprep.subr.bf16.mxu0 0
    %556 = vmatpush1.bf16.msra.mxu0 %v510
    %557 = vmatprep.subr.bf16.mxu0 0
    %558 = vmatpush1.bf16.msra.mxu0 %v511
    %559 = vmatprep.subr.bf16.mxu0 0
    %560 = vmatpush1.bf16.msra.mxu0 %v512
    %561 = vmatprep.mubr.bf16.mxu0 %v395
    %562 = vmatmul.mubr.bf16.gmra.mrb[0].mxu0 %v394
    %v563 = vpop.f32.mrb[0].mxu0
    %v564 = vadd.f32 %v432, %v563
    %v565 = vpop.f32.mrb[0].mxu0
    %v566 = vpop.f32.mrb[0].mxu0
    %v567 = vpop.f32.mrb[0].mxu0
    %568 = vdwg.mxu0
    %569 = vst [vmem:[%s6] sm:$0xff] %v564
    // Predicated region
    $region46: #{_dqn_forward_impl.1} parent=1 // pred_check
      _
    $region47: #{_dqn_forward_impl.1} parent=1 // pred_check_branch
      %571 = sbr.rel (0) target = $region49
    $region48: #{_dqn_forward_impl.1} parent=1 // pred_region
      _
    $region49: #{_dqn_forward_impl.1} parent=1 // pred_fallthru
      _
    // Predicated region
    $region50: #{_dqn_forward_impl.1} parent=1 // pred_check
      _
    $region51: #{_dqn_forward_impl.1} parent=1 // pred_check_branch
      %573 = sbr.rel (0) target = $region53
    $region52: #{_dqn_forward_impl.1} parent=1 // pred_region
      _
    $region53: #{_dqn_forward_impl.1} parent=1 // pred_fallthru
      _
    %574 = vsyncpa [#allocation3], 1
    %575 = vsyncpa [#allocation5], 1
    %576 = vsyncpa [#allocation8], 1

</llo_original>
